<compile_context>
chip_gen: v7x
topology: tpu7x:2x2x1
jax: 0.10.0
libtpu: 0.0.40
codegen_flags: <defaults>
</compile_context>

<pallas_src>
import math

import jax
import jax.numpy as jnp
from jax.experimental import pallas as pl
from jax.experimental.pallas import tpu as pltpu

_XLA_FAST_PATH_MAX_BYTES = 4 * 1024 * 1024   # below this, a fused XLA add wins
_VMEM_BUDGET_CAP = 96 * 1024 * 1024


def _vmem_budget_bytes() -> int:
    """Generation-aware VMEM budget: 3/4 of physical, capped at 96 MiB."""
    try:
        cap = int(pltpu.get_tpu_info().vmem_capacity_bytes)
    except Exception:
        cap = 64 * 1024 * 1024            # assume the smallest (v7x per-TC VMEM)
    return min((cap * 3) // 4, _VMEM_BUDGET_CAP)


def _choose_tile_rows(xc: int, X: int, yc: int, Y: int, itemsize: int,
                      vmem_budget: int):
    """Largest multiple-of-8 x-tile that divides both x_cutoff and the padded X
    and whose double-buffered working set fits the VMEM budget (else None)."""
    if xc % 8 != 0 or X % 8 != 0 or X % xc != 0 and math.gcd(xc, X) < 8:
        pass  # handled by the divisor search below
    # bias block + out block (Y lanes each) + AB block (yc lanes), x2 buffers
    bytes_per_row = 2 * (2 * Y + yc) * itemsize
    max_rows = vmem_budget // max(bytes_per_row, 1)
    if max_rows < 8:
        return None
    g = math.gcd(xc, X)
    best = None
    d = 8
    while d <= g:
        if g % d == 0 and d <= max_rows:
            best = d
        d += 8
    return best


def _make_bias_add_kernel(nx_ab: int, yc: int):
    """result = bias everywhere; rows inside the AB region also add AB on the
    first yc lanes.  Pure VPU work on VMEM tiles; the op is HBM-bound."""
    def kernel(ab_ref, bias_ref, out_ref):
        out_ref[...] = bias_ref[...]
        @pl.when(pl.program_id(1) < nx_ab)
        def _():
            out_ref[:, :, 0:yc] = bias_ref[:, :, 0:yc] + ab_ref[...]
    return kernel


def _forward_pallas(ab: jax.Array, bias: jax.Array, tile_rows: int,
                    vmem_budget: int) -> jax.Array:
    b2, c, xc, yc = ab.shape
    _, _, X, Y = bias.shape
    G = b2 * c

    # Reshape-only layout plumbing (no pads, no copies).
    ab3 = ab.reshape(G, xc, yc)
    bias3 = bias.reshape(G, X, Y)

    nx = X // tile_rows
    nx_ab = xc // tile_rows

    out3 = pl.pallas_call(
        _make_bias_add_kernel(nx_ab, yc),
        out_shape=jax.ShapeDtypeStruct((G, X, Y), bias.dtype),
        grid=(G, nx),
        in_specs=[
            # AB: clamp the x-block index so steps past the AB region request
            # the same block as the previous step -> Pallas skips the re-DMA.
            pl.BlockSpec((1, tile_rows, yc),
                         lambda g, xi: (g, jnp.minimum(xi, nx_ab - 1), 0)),
            pl.BlockSpec((1, tile_rows, Y), lambda g, xi: (g, xi, 0)),
        ],
        out_specs=pl.BlockSpec((1, tile_rows, Y), lambda g, xi: (g, xi, 0)),
        compiler_params=pltpu.CompilerParams(
            # (2*C) axis is independent (v7x megacore candidate); x-tile axis
            # stays sequential so the clamped-index AB elision holds.
            # TODO(synk): confirm megacore sharding on v7x in a trace; switch
            # the leading axis to pltpu.CORE_PARALLEL if one TC sits idle.
            dimension_semantics=("parallel", "arbitrary"),
            vmem_limit_bytes=vmem_budget,
        ),
    )(ab3, bias3)
    return out3.reshape(bias.shape)


def _forward_xla(ab: jax.Array, bias: jax.Array) -> jax.Array:
    """Fused XLA fallback / small-input fast path: one pass over bias/out."""
    xc, yc = ab.shape[-2], ab.shape[-1]
    return bias.at[..., :xc, :yc].add(ab)


def _forward_dispatch(ab: jax.Array, bias: jax.Array, force_pallas: bool = False):
    assert ab.ndim == 4 and bias.ndim == 4, (ab.shape, bias.shape)
    assert ab.shape[:2] == bias.shape[:2], (ab.shape, bias.shape)
    assert ab.shape[2] <= bias.shape[2] and ab.shape[3] <= bias.shape[3]
    assert ab.dtype == bias.dtype, (ab.dtype, bias.dtype)

    out_bytes = bias.size * bias.dtype.itemsize
    if not force_pallas and out_bytes < _XLA_FAST_PATH_MAX_BYTES:
        return _forward_xla(ab, bias)

    vmem_budget = _vmem_budget_bytes()
    tile_rows = _choose_tile_rows(ab.shape[2], bias.shape[2],
                                  ab.shape[3], bias.shape[3],
                                  bias.dtype.itemsize, vmem_budget)
    if tile_rows is None:
        # TODO(synk): handle x_cutoff not a multiple of 8 (ragged x tiles) with
        # an in-kernel row mask instead of falling back to fused XLA.
        return _forward_xla(ab, bias)
    return _forward_pallas(ab, bias, tile_rows, vmem_budget)


bias_network_forward = jax.jit(_forward_dispatch, static_argnames=("force_pallas",))


class BiasNetworkJax:
    """JAX/Pallas port of the PyTorch BiasNetwork module.

    Unlike the PyTorch module, the zero-padded AB is never materialized: the
    original AB is kept and the kernel adds it into the matching sub-rectangle
    of the padded-shape bias.  All *_magnitude properties match the PyTorch
    module because the dropped padding is all zeros.
    """

    def __init__(self, AB: jax.Array, extra_freq_scaling: int = 1, *, key=None):
        _, _, x_cutoff, y_cutoff = AB.shape
        self.AB = AB                              # unpadded; padding is implicit
        self.padded_shape = (
            AB.shape[0], AB.shape[1],
            x_cutoff * (1 + extra_freq_scaling),
            y_cutoff * (1 + extra_freq_scaling),
        )
        if key is None:
            key = jax.random.PRNGKey(0)
        numel = math.prod(self.padded_shape)
        # torch.rand_like(padded) / padded.numel(): uniform[0,1) / numel.
        # (jax.random.uniform is not bitwise-identical to torch.rand_like.)
        # TODO(synk): bias is a learnable parameter so it stays materialized;
        # regenerating it in-kernel (pltpu.prng_random_bits) would cut forward
        # HBM traffic 3N -> 2N but change init values / parameter semantics.
        self.bias = (
            jax.random.uniform(key, self.padded_shape, dtype=AB.dtype) / numel
        )
        self.result = AB

    def forward(self) -> jax.Array:
        self.result = bias_network_forward(self.AB, self.bias)
        return self.result

    @property
    def result_magnitude(self):
        return (jnp.abs(self.result[0]).sum(), jnp.abs(self.result[1]).sum())

    @property
    def bias_magnitude(self):
        return (jnp.abs(self.bias[0]).sum(), jnp.abs(self.bias[1]).sum())

    @property
    def original_magnitude(self):
        # Padding is all zeros, so |unpadded AB| sums match the PyTorch module.
        return (jnp.abs(self.AB[0]).sum(), jnp.abs(self.AB[1]).sum())


if __name__ == "__main__":
    key = jax.random.PRNGKey(0)
    k_ab, k_bias, k_big_ab, k_big_bias = jax.random.split(key, 4)

    # --- Small module-scale example: AB [2 (A/B), C=4, x_cutoff=8, y_cutoff=8]
    AB = jax.random.normal(k_ab, (2, 4, 8, 8), dtype=jnp.float32)
    net = BiasNetworkJax(AB, extra_freq_scaling=1, key=k_bias)

    # Exercise the Pallas kernel explicitly at this size (the class forward
    # takes the small-input XLA fast path here).
    result = bias_network_forward(net.AB, net.bias, force_pallas=True)
    result = jax.block_until_ready(result)

    ref = net.bias + jnp.pad(AB, ((0, 0), (0, 0), (0, 8), (0, 8)))
    assert result.shape == (2, 4, 16, 16), result.shape
    assert jnp.allclose(result, ref, atol=1e-6), "small mismatch vs reference"

    # Class forward (fused XLA fast path at this size) must agree too.
    out_cls = jax.block_until_ready(net.forward())
    assert jnp.allclose(out_cls, ref, atol=1e-6), "class forward mismatch"

    # --- Larger case: takes the Pallas path in the class forward, exercises
    # multiple grid steps, both pl.when branches and the clamped AB index_map.
    big_AB = jax.random.normal(k_big_ab, (2, 4, 256, 320), dtype=jnp.float32)
    big_net = BiasNetworkJax(big_AB, extra_freq_scaling=1, key=k_big_bias)
    big_out = jax.block_until_ready(big_net.forward())
    big_ref = big_net.bias + jnp.pad(big_AB, ((0, 0), (0, 0), (0, 256), (0, 320)))
    assert big_out.shape == (2, 4, 512, 640), big_out.shape
    assert jnp.allclose(big_out, big_ref, atol=1e-6), "big mismatch vs reference"

    print("KERNEL_OK")
</pallas_src>

<mosaic_0001>
module attributes {stable_mosaic.version = 11 : i64} {
  func.func @kernel(%arg0: i32, %arg1: i32, %arg2: memref<1x8x8xf32, #tpu.memory_space<vmem>>, %arg3: memref<1x8x16xf32, #tpu.memory_space<vmem>>, %arg4: memref<1x8x16xf32, #tpu.memory_space<vmem>>) attributes {dimension_semantics = [#tpu.dimension_semantics<parallel>, #tpu.dimension_semantics<arbitrary>], iteration_bounds = array<i64: 8, 2>, scalar_prefetch = 0 : i64, scratch_operands = 0 : i64, tpu.core_type = #tpu.core_type<tc>, window_params = [{transform_indices = @transform_0, window_bounds = array<i64: 1, 8, 8>}, {transform_indices = @transform_1, window_bounds = array<i64: 1, 8, 16>}, {transform_indices = @transform_2, window_bounds = array<i64: 1, 8, 16>}]} {
    %c0 = arith.constant 0 : index
    %c0_0 = arith.constant 0 : index
    %c0_1 = arith.constant 0 : index
    %0 = vector.load %arg3[%c0, %c0_0, %c0_1] : memref<1x8x16xf32, #tpu.memory_space<vmem>>, vector<1x8x16xf32>
    %c0_2 = arith.constant 0 : index
    %c0_3 = arith.constant 0 : index
    %c0_4 = arith.constant 0 : index
    %1 = vector.load %arg4[%c0_2, %c0_3, %c0_4] : memref<1x8x16xf32, #tpu.memory_space<vmem>>, vector<1x8x16xf32>
    tpu.vector_store %arg4[%c0_2, %c0_3, %c0_4], %0 {strides = array<i32>} : memref<1x8x16xf32, #tpu.memory_space<vmem>>, vector<1x8x16xf32>,
    %c1_i32 = arith.constant 1 : i32
    %2 = arith.cmpi slt, %arg1, %c1_i32 : i32
    %3 = arith.extui %2 : i1 to i32
    %c0_i32 = arith.constant 0 : i32
    %4 = arith.cmpi ne, %3, %c0_i32 : i32
    scf.if %4 {
      %c0_5 = arith.constant 0 : index
      %c0_6 = arith.constant 0 : index
      %c0_7 = arith.constant 0 : index
      %5 = vector.load %arg3[%c0_5, %c0_6, %c0_7] : memref<1x8x16xf32, #tpu.memory_space<vmem>>, vector<1x8x8xf32>
      %c0_8 = arith.constant 0 : index
      %c0_9 = arith.constant 0 : index
      %c0_10 = arith.constant 0 : index
      %6 = vector.load %arg2[%c0_8, %c0_9, %c0_10] : memref<1x8x8xf32, #tpu.memory_space<vmem>>, vector<1x8x8xf32>
      %7 = arith.addf %5, %6 : vector<1x8x8xf32>
      %c0_11 = arith.constant 0 : index
      %c0_12 = arith.constant 0 : index
      %c0_13 = arith.constant 0 : index
      %8 = vector.load %arg4[%c0_11, %c0_12, %c0_13] : memref<1x8x16xf32, #tpu.memory_space<vmem>>, vector<1x8x8xf32>
      tpu.vector_store %arg4[%c0_11, %c0_12, %c0_13], %7 {strides = array<i32>} : memref<1x8x16xf32, #tpu.memory_space<vmem>>, vector<1x8x8xf32>,
    } else {
    }
    return
  }
  func.func @transform_0(%arg0: i32, %arg1: i32) -> (i32, i32, i32) {
    %c0_i32 = arith.constant 0 : i32
    %0 = arith.minsi %arg1, %c0_i32 : i32
    %c0_i32_0 = arith.constant 0 : i32
    %c0_i32_1 = arith.constant 0 : i32
    return %arg0, %0, %c0_i32_0 : i32, i32, i32
  }
  func.func @transform_1(%arg0: i32, %arg1: i32) -> (i32, i32, i32) {
    %c0_i32 = arith.constant 0 : i32
    %c0_i32_0 = arith.constant 0 : i32
    return %arg0, %arg1, %c0_i32 : i32, i32, i32
  }
  func.func @transform_2(%arg0: i32, %arg1: i32) -> (i32, i32, i32) {
    %c0_i32 = arith.constant 0 : i32
    %c0_i32_0 = arith.constant 0 : i32
    return %arg0, %arg1, %c0_i32 : i32, i32, i32
  }
}

</mosaic_0001>

<llo_original>
// kernel: _forward_dispatch.1
$region0: #{_forward_dispatch.1}
  #allocation0 [shape = 'u32[]', space=smem, size = 0x4, offset = 0x4, fixed_abs, tag = 'smem constant byte address 0x4 - core index']
  #allocation1 [shape = 'u32[144,128]{1,0:T(1,128)}', space=vmem, size = 0x12000, scoped, tag = 'internal scratch']
  %s0 = inlined_call_operand.hbm [shape: f32[8,8,8], index: 0, kind: input, shape index: {}]
  %s1 = inlined_call_operand.hbm [shape: f32[8,16,16], index: 1, kind: input, shape index: {}]
  %s2 = inlined_call_operand.hbm [shape: f32[8,16,16], index: 2, kind: output, shape index: {}]
  %s3 = sld [smem:[#allocation0]]
  $region53: #{_forward_dispatch.1} parent=0
    _
  %s5 = ssub.s32 1, %s3
  %s6 = scalar_select 0, %s5, %s3
  $region1: #{_forward_dispatch.1} parent=0
    #allocation2 [shape = 'u8[8192]{0}', space=vmem, size = 0x2000, scoped, tag = 'input window, operand 0']
    #allocation3 [shape = 's32[2]{0}', space=sflag, size = 0x8, scoped, tag = 'scoped memory for _forward_dispatch.1']
    #allocation4 [shape = 's32[2]{0}', space=sflag, size = 0x8, scoped, tag = 'scoped memory for _forward_dispatch.1']
    #allocation5 [shape = 'u8[8192]{0}', space=vmem, size = 0x2000, scoped, tag = 'input window, operand 1']
    #allocation6 [shape = 's32[2]{0}', space=sflag, size = 0x8, scoped, tag = 'scoped memory for _forward_dispatch.1']
    #allocation7 [shape = 'u8[8192]{0}', space=vmem, size = 0x2000, scoped, tag = 'output window, operand 0']
    %7 = vsyncpa [#allocation3], 0
    %s8 = scalar_lea.sflag [#allocation3], 1
    %9 = vsyncpa %s8, 0
    %10 = vsyncpa [#allocation6], 0
    %s11 = scalar_lea.sflag [#allocation6], 1
    %12 = vsyncpa %s11, 0
    %13 = vsyncpa [#allocation4], 0
    %s14 = scalar_lea.sflag [#allocation4], 1
    %15 = vsyncpa %s14, 0
    loop: start=0, step=1, limit=18
    $region2: #{_forward_dispatch.1} parent=1 // loop_pre_header
      _
    $region3: #{_forward_dispatch.1} parent=1 // loop_header
      %s17 = sphi 0, %s21
      %p18 = scmp.ge.s32.totalorder %s17, 18
      %s24 = sphi 0, %s36
      %s25 = sphi 0, %s32
      %s26 = sphi 0, %s24
      %s27 = sphi 0, %s25
      %s28 = sphi 0, %s26
      %s29 = sphi 0, %s27
      %s45 = sphi 0, %s47
      %s48 = sphi 0, %s45
      %s49 = sphi 0, %s48
      %s65 = sphi 0, %s49
      %s73 = sphi 0, %s75
      %s76 = sphi 0, %s73
      %s77 = sphi 0, %s76
      %s93 = sphi 0, %s77
      %s101 = sphi 0, %s103
      %s104 = sphi 0, %s101
      %s105 = sphi 0, %s104
      %s121 = sphi 0, %s105
    $region4: #{_forward_dispatch.1} parent=1 // loop_header_branch
      %20 = sbr.rel (%p18) target = $region8
    $region5: #{_forward_dispatch.1} parent=1 // loop_body
      %s22 = ssub.s32 %s17, 1
      %s23 = ssub.s32 %s17, 2
      %s30 = sadd.s32 1, %s25
      %p31 = scmp.ge.s32.totalorder %s30, 2
      %s32 = scalar_select %p31, 0, %s30
      %s33 = sadd.s32 1, %s24
      %s34 = scalar_select %p31, %s33, %s24
      %p35 = scmp.ge.s32.totalorder %s34, 8
      %s36 = scalar_select %p35, 0, %s34
      %p37 = scmp.lt.s32.totalorder %s25, 0
      %s38 = scalar_select %p37, %s25, 0
      %p39 = scmp.lt.s32.totalorder %s32, 0
      %s40 = scalar_select %p39, %s32, 0
      %s41 = ssub.s32 %s24, %s36
      %s42 = ssub.s32 %s38, %s40
      %s43 = sor.u32 %s41, %s42
      %p44 = scmp.eq.s32.totalorder %s43, 0
      %s46 = sadd.s32 %s45, 1
      %s47 = scalar_select %p44, %s45, %s46
      %p50 = pneg %p44
      %p51 = scmp.eq.s32.totalorder %s17, 15
      %p52 = por %p50, %p51
      %p53 = scmp.ne.s32.totalorder %s45, %s48
      %p54 = scmp.eq.s32.totalorder %s17, 0
      %p55 = por %p53, %p54
      %p56 = scmp.ne.s32.totalorder %s45, %s48
      %p57 = scmp.eq.s32.totalorder %s22, 15
      %p58 = por %p56, %p57
      %p59 = scmp.ne.s32.totalorder %s48, %s49
      %p60 = scmp.eq.s32.totalorder %s22, 0
      %p61 = por %p59, %p60
      %p62 = scmp.ne.s32.totalorder %s48, %s49
      %p63 = scmp.eq.s32.totalorder %s23, 15
      %p64 = por %p62, %p63
      %p66 = scmp.ne.s32.totalorder %s49, %s65
      %p67 = scmp.eq.s32.totalorder %s23, 0
      %p68 = por %p66, %p67
      %s69 = ssub.s32 %s24, %s36
      %s70 = ssub.s32 %s25, %s32
      %s71 = sor.u32 %s69, %s70
      %p72 = scmp.eq.s32.totalorder %s71, 0
      %s74 = sadd.s32 %s73, 1
      %s75 = scalar_select %p72, %s73, %s74
      %p78 = pneg %p72
      %p79 = scmp.eq.s32.totalorder %s17, 15
      %p80 = por %p78, %p79
      %p81 = scmp.ne.s32.totalorder %s73, %s76
      %p82 = scmp.eq.s32.totalorder %s17, 0
      %p83 = por %p81, %p82
      %p84 = scmp.ne.s32.totalorder %s73, %s76
      %p85 = scmp.eq.s32.totalorder %s22, 15
      %p86 = por %p84, %p85
      %p87 = scmp.ne.s32.totalorder %s76, %s77
      %p88 = scmp.eq.s32.totalorder %s22, 0
      %p89 = por %p87, %p88
      %p90 = scmp.ne.s32.totalorder %s76, %s77
      %p91 = scmp.eq.s32.totalorder %s23, 15
      %p92 = por %p90, %p91
      %p94 = scmp.ne.s32.totalorder %s77, %s93
      %p95 = scmp.eq.s32.totalorder %s23, 0
      %p96 = por %p94, %p95
      %s97 = ssub.s32 %s24, %s36
      %s98 = ssub.s32 %s25, %s32
      %s99 = sor.u32 %s97, %s98
      %p100 = scmp.eq.s32.totalorder %s99, 0
      %s102 = sadd.s32 %s101, 1
      %s103 = scalar_select %p100, %s101, %s102
      %p106 = pneg %p100
      %p107 = scmp.eq.s32.totalorder %s17, 15
      %p108 = por %p106, %p107
      %p109 = scmp.ne.s32.totalorder %s101, %s104
      %p110 = scmp.eq.s32.totalorder %s17, 0
      %p111 = por %p109, %p110
      %p112 = scmp.ne.s32.totalorder %s101, %s104
      %p113 = scmp.eq.s32.totalorder %s22, 15
      %p114 = por %p112, %p113
      %p115 = scmp.ne.s32.totalorder %s104, %s105
      %p116 = scmp.eq.s32.totalorder %s22, 0
      %p117 = por %p115, %p116
      %p118 = scmp.ne.s32.totalorder %s104, %s105
      %p119 = scmp.eq.s32.totalorder %s23, 15
      %p120 = por %p118, %p119
      %p122 = scmp.ne.s32.totalorder %s105, %s121
      %p123 = scmp.eq.s32.totalorder %s23, 0
      %p124 = por %p122, %p123
      %p125 = scmp.le.s32.totalorder 1, %s17
      %p126 = scmp.lt.s32.totalorder %s17, 17
      %p127 = pnand %p125, %p126
      %p128 = pneg %p127
      // Predicated region
      $region9: #{_forward_dispatch.1} parent=5 // pred_check
        _
      $region10: #{_forward_dispatch.1} parent=5 // pred_check_branch
        %130 = sbr.rel (%p127) target = $region12
      $region11: #{_forward_dispatch.1} parent=5 // pred_region
        %s131 = ssub.s32 %s17, 1
      $region12: #{_forward_dispatch.1} parent=5 // pred_fallthru
        _
      %p132 = scmp.lt.s32.totalorder %s17, 16
      // Predicated region
      $region13: #{_forward_dispatch.1} parent=5 // pred_check
        %p133 = pneg %p132
      $region14: #{_forward_dispatch.1} parent=5 // pred_check_branch
        %135 = sbr.rel (%p133) target = $region16
      $region15: #{_forward_dispatch.1} parent=5 // pred_region
        // Predicated region
        $region17: #{_forward_dispatch.1} parent=15 // pred_check
          %p136 = pneg %p55
        $region18: #{_forward_dispatch.1} parent=15 // pred_check_branch
          %138 = sbr.rel (%p136) target = $region20
        $region19: #{_forward_dispatch.1} parent=15 // pred_region
          %s139 = sand.u32 %s45, 1
          %s140 = scalar_lea.sflag [#allocation3], %s139
          %s141 = sand.u32 %s45, 1
          %s142 = smul.addr %s141, 8
          %s143 = scalar_lea.vmem [#allocation2], %s142
          %p144 = scmp.lt.s32.totalorder %s25, 0
          %s145 = scalar_select %p144, %s25, 0
          %s147 = ssub.s32 128, 128
          %148 = vsyncadd %s140, %s147
          %s149 = sadd.s32 %s145, %s24
          %s150 = smul.addr %s149, 128
          %s151 = scalar_lea.hbm %s0, %s150
          %s153 = sshll.u32 %s143, 4
          %s154 = int_to_ptr.vmem [resolvable:$true] %s153
          %156 = dma.hbm_to_vmem [thread:$0]  %s151, 128, %s154, %s140
        $region20: #{_forward_dispatch.1} parent=15 // pred_fallthru
          _
        // Predicated region
        $region21: #{_forward_dispatch.1} parent=15 // pred_check
          %p157 = pneg %p83
        $region22: #{_forward_dispatch.1} parent=15 // pred_check_branch
          %159 = sbr.rel (%p157) target = $region24
        $region23: #{_forward_dispatch.1} parent=15 // pred_region
          %s160 = sand.u32 %s73, 1
          %s161 = scalar_lea.sflag [#allocation6], %s160
          %s162 = sand.u32 %s73, 1
          %s163 = smul.addr %s162, 8
          %s164 = scalar_lea.vmem [#allocation5], %s163
          %s166 = ssub.s32 128, 128
          %167 = vsyncadd %s161, %s166
          %s168 = smul.addr %s24, 2
          %s169 = sadd.s32 %s25, %s168
          %s170 = smul.addr %s169, 128
          %s171 = scalar_lea.hbm %s1, %s170
          %s173 = sshll.u32 %s164, 4
          %s174 = int_to_ptr.vmem [resolvable:$true] %s173
          %176 = dma.hbm_to_vmem [thread:$0]  %s171, 128, %s174, %s161
        $region24: #{_forward_dispatch.1} parent=15 // pred_fallthru
          _
      $region16: #{_forward_dispatch.1} parent=5 // pred_fallthru
        _
      %p177 = scmp.le.s32.totalorder 1, %s17
      %p178 = scmp.lt.s32.totalorder %s17, 17
      %p179 = pnand %p177, %p178
      %p180 = pneg %p179
      // Predicated region
      $region25: #{_forward_dispatch.1} parent=5 // pred_check
        _
      $region26: #{_forward_dispatch.1} parent=5 // pred_check_branch
        %182 = sbr.rel (%p179) target = $region28
      $region27: #{_forward_dispatch.1} parent=5 // pred_region
        %s183 = ssub.s32 %s17, 1
        %s184 = sand.u32 %s48, 1
        %s185 = scalar_lea.sflag [#allocation3], %s184
        %s186 = sand.u32 %s48, 1
        %s187 = smul.addr %s186, 8
        %s188 = scalar_lea.vmem [#allocation2], %s187
        // Predicated region
        $region29: #{_forward_dispatch.1} parent=27 // pred_check
          %p189 = pneg %p61
        $region30: #{_forward_dispatch.1} parent=27 // pred_check_branch
          %191 = sbr.rel (%p189) target = $region32
        $region31: #{_forward_dispatch.1} parent=27 // pred_region
          %192 = dma.done %s185, 128
        $region32: #{_forward_dispatch.1} parent=27 // pred_fallthru
          _
        %s193 = sand.u32 %s76, 1
        %s194 = scalar_lea.sflag [#allocation6], %s193
        %s195 = sand.u32 %s76, 1
        %s196 = smul.addr %s195, 8
        %s197 = scalar_lea.vmem [#allocation5], %s196
        // Predicated region
        $region33: #{_forward_dispatch.1} parent=27 // pred_check
          %p198 = pneg %p89
        $region34: #{_forward_dispatch.1} parent=27 // pred_check_branch
          %200 = sbr.rel (%p198) target = $region36
        $region35: #{_forward_dispatch.1} parent=27 // pred_region
          %201 = dma.done %s194, 128
        $region36: #{_forward_dispatch.1} parent=27 // pred_fallthru
          _
        %s202 = sand.u32 %s48, 1
        %s203 = scalar_lea.sflag [#allocation3], %s202
        %s204 = sand.u32 %s48, 1
        %s205 = smul.addr %s204, 8
        %s206 = scalar_lea.vmem [#allocation2], %s205
        %p207 = pneg %p61
        %p208 = pneg %p58
        %s209 = sand.u32 %s76, 1
        %s210 = scalar_lea.sflag [#allocation6], %s209
        %s211 = sand.u32 %s76, 1
        %s212 = smul.addr %s211, 8
        %s213 = scalar_lea.vmem [#allocation5], %s212
        %p214 = pneg %p89
        %p215 = pneg %p86
        %p216 = pneg %p117
        %p217 = pneg %p114
        %s218 = sand.u32 %s104, 1
        %s219 = scalar_lea.sflag [#allocation4], %s218
        %s220 = sand.u32 %s104, 1
        %s221 = smul.addr %s220, 8
        %s222 = scalar_lea.vmem [#allocation7], %s221
        %p223 = scmp.lt.s32.totalorder %s27, 0
        %s224 = scalar_select %p223, %s27, 0
        %v225 = vld [vmem:[%s197] sm:$0xff]
        %vm226 = vcmask 130048
        %227 = vst.msk [vmem:[%s222] sm:$0xff] %vm226, %v225
        %p228 = scmp.lt.s32.totalorder %s27, 1
        // Predicated region
        $region37: #{_forward_dispatch.1} parent=27 // pred_check
          %p229 = pneg %p228
        $region38: #{_forward_dispatch.1} parent=27 // pred_check_branch
          %231 = sbr.rel (%p229) target = $region40
        $region39: #{_forward_dispatch.1} parent=27 // pred_region
          %v232 = vld [vmem:[%s197] sm:$0xff]
          %v233 = vld [vmem:[%s188] sm:$0xff]
          %v234 = vadd.f32 %v232, %v233
          %vm235 = vcmask 64512
          %236 = vst.msk [vmem:[%s222] sm:$0xff] %vm235, %v234
        $region40: #{_forward_dispatch.1} parent=27 // pred_fallthru
          _
        %s237 = sand.u32 %s104, 1
        %s238 = scalar_lea.sflag [#allocation4], %s237
        %s239 = sand.u32 %s104, 1
        %s240 = smul.addr %s239, 8
        %s241 = scalar_lea.vmem [#allocation7], %s240
        // Predicated region
        $region41: #{_forward_dispatch.1} parent=27 // pred_check
          %p242 = pneg %p114
        $region42: #{_forward_dispatch.1} parent=27 // pred_check_branch
          %244 = sbr.rel (%p242) target = $region44
        $region43: #{_forward_dispatch.1} parent=27 // pred_region
          %s246 = ssub.s32 128, 128
          %247 = vsyncadd %s238, %s246
          %s248 = smul.addr %s26, 2
          %s249 = sadd.s32 %s27, %s248
          %s250 = smul.addr %s249, 128
          %s251 = scalar_lea.hbm %s2, %s250
          %s253 = sshll.u32 %s241, 4
          %s254 = int_to_ptr.vmem [resolvable:$true] %s253
          %256 = dma.vmem_to_hbm [thread:$0]  %s254, 128, %s251, %s238
        $region44: #{_forward_dispatch.1} parent=27 // pred_fallthru
          _
      $region28: #{_forward_dispatch.1} parent=5 // pred_fallthru
        _
      %p257 = scmp.le.s32.totalorder 2, %s17
      // Predicated region
      $region45: #{_forward_dispatch.1} parent=5 // pred_check
        %p258 = pneg %p257
      $region46: #{_forward_dispatch.1} parent=5 // pred_check_branch
        %260 = sbr.rel (%p258) target = $region48
      $region47: #{_forward_dispatch.1} parent=5 // pred_region
        %s261 = ssub.s32 %s17, 2
        // Predicated region
        $region49: #{_forward_dispatch.1} parent=47 // pred_check
          %p262 = pneg %p120
        $region50: #{_forward_dispatch.1} parent=47 // pred_check_branch
          %264 = sbr.rel (%p262) target = $region52
        $region51: #{_forward_dispatch.1} parent=47 // pred_region
          %s265 = sand.u32 %s105, 1
          %s266 = scalar_lea.sflag [#allocation4], %s265
          %s267 = sand.u32 %s105, 1
          %s268 = smul.addr %s267, 8
          %s269 = scalar_lea.vmem [#allocation7], %s268
          %270 = dma.done %s266, 128
        $region52: #{_forward_dispatch.1} parent=47 // pred_fallthru
          _
      $region48: #{_forward_dispatch.1} parent=5 // pred_fallthru
        _
    $region6: #{_forward_dispatch.1} parent=1 // loop_footer
      %s21 = sadd.s32 1, %s17
    $region7: #{_forward_dispatch.1} parent=1 // loop_footer_branch
      %16 = sbr.rel target = $region3
    $region8: #{_forward_dispatch.1} parent=1 // loop_exit
      _
    %271 = vsyncpa [#allocation3], 1
    %s272 = scalar_lea.sflag [#allocation3], 1
    %273 = vsyncpa %s272, 1
    %274 = vsyncpa [#allocation6], 1
    %s275 = scalar_lea.sflag [#allocation6], 1
    %276 = vsyncpa %s275, 1
    %277 = vsyncpa [#allocation4], 1
    %s278 = scalar_lea.sflag [#allocation4], 1
    %279 = vsyncpa %s278, 1

</llo_original>
